<compile_context>
chip_gen: v6e
topology: v6e:2x2x1
jax: 0.10.0
libtpu: 0.0.40
codegen_flags: <defaults>
</compile_context>

<pallas_src>
import jax
import jax.numpy as jnp
from jax.experimental import pallas as pl
from jax.experimental.pallas import tpu as pltpu

D_IN = 192    # encoder feature dim (fc1/fc2 input, fc3 output)
D_LAT = 32    # latent dim (fc1/fc2 output, fc3 input)
D_OUT = D_IN + 2 * D_LAT  # packed output width: z3 | mu | logvar = 256 lanes


def _emonet_bottleneck_kernel(h_ref, eps_ref,
                              w12_ref, b12_ref,
                              w3_ref, b3_ref,
                              out_ref):
    # One row-block per grid step; weights/biases are VMEM-resident for all steps.
    h = h_ref[...]                                     # [tm, 192]
    eps = eps_ref[...]                                 # [tm, 32]

    # Fused fc1|fc2 : Linear(192 -> 64)  (single MXU matmul, f32 accumulation)
    mu_lv = jnp.dot(h, w12_ref[...],
                    preferred_element_type=jnp.float32) + b12_ref[...]   # [tm, 64]
    mu = mu_lv[:, :D_LAT]                              # [tm, 32]
    logvar = mu_lv[:, D_LAT:]                          # [tm, 32]

    # reparameterize: std = exp(0.5 * logvar); z = mu + std * eps  (EUP exp + VPU)
    std = jnp.exp(0.5 * logvar)
    z = mu + std * eps                                 # [tm, 32]

    # fc3 : Linear(32 -> 192)
    z3 = jnp.dot(z, w3_ref[...],
                 preferred_element_type=jnp.float32) + b3_ref[...]       # [tm, 192]

    # Lane-dense packed output: [tm, 256] = z3 | mu | logvar  -> unmasked stores.
    out_ref[...] = jnp.concatenate([z3, mu_lv], axis=-1)


def _round_up(x, m):
    return (x + m - 1) // m * m


def emonet_bottleneck(h, eps, params, *, block_rows=1024):
    """h: [B, 192] f32, eps: [B, 32] f32 (stand-in for torch.randn in reparameterize).

    Returns (z3, mu, logvar) with z3 = fc3(reparameterize(fc1(h), fc2(h))).
    """
    B = h.shape[0]

    # Pack fc1|fc2 into a single [192, 64] weight / [1, 64] bias.
    w12 = jnp.concatenate([params["w1"], params["w2"]], axis=1)   # [192, 64]
    b12 = jnp.concatenate([params["b1"], params["b2"]], axis=1)   # [1, 64]
    w3, b3 = params["w3"], params["b3"]                           # [32, 192], [1, 192]

    # Row-block size: multiple of 8 sublanes, capped so tiny batches stay tiny.
    tm = min(block_rows, _round_up(B, 8))
    Bp = _round_up(B, tm)
    if Bp != B:
        pad = Bp - B
        h = jnp.pad(h, ((0, pad), (0, 0)))
        eps = jnp.pad(eps, ((0, pad), (0, 0)))

    grid = (Bp // tm,)

    packed = pl.pallas_call(
        _emonet_bottleneck_kernel,
        out_shape=jax.ShapeDtypeStruct((Bp, D_OUT), jnp.float32),
        grid=grid,
        in_specs=[
            # Activations: tiled along batch, auto double-buffered.
            pl.BlockSpec((tm, D_IN), lambda i: (i, 0)),
            pl.BlockSpec((tm, D_LAT), lambda i: (i, 0)),
            # Weights / biases: constant index_map -> DMA'd once, stay resident.
            pl.BlockSpec((D_IN, 2 * D_LAT), lambda i: (0, 0)),
            pl.BlockSpec((1, 2 * D_LAT), lambda i: (0, 0)),
            pl.BlockSpec((D_LAT, D_IN), lambda i: (0, 0)),
            pl.BlockSpec((1, D_IN), lambda i: (0, 0)),
        ],
        out_specs=pl.BlockSpec((tm, D_OUT), lambda i: (i, 0)),
        compiler_params=pltpu.CompilerParams(
            dimension_semantics=("parallel",),   # shards batch across TCs on v7x
        ),
    )(h, eps, w12, b12, w3, b3)

    z3 = packed[:B, :D_IN]
    mu = packed[:B, D_IN:D_IN + D_LAT]
    logvar = packed[:B, D_IN + D_LAT:]
    return z3, mu, logvar


def init_params(key):
    """Deterministic synthetic parameters matching the nn.Linear shapes."""
    k1, k2, k3, k4, k5, k6 = jax.random.split(key, 6)
    scale = 0.02
    return {
        # stored as [in, out] (PyTorch stores [out, in]); biases kept 2D for TPU layout
        "w1": scale * jax.random.normal(k1, (D_IN, D_LAT), jnp.float32),
        "b1": scale * jax.random.normal(k2, (1, D_LAT), jnp.float32),
        "w2": scale * jax.random.normal(k3, (D_IN, D_LAT), jnp.float32),
        "b2": scale * jax.random.normal(k4, (1, D_LAT), jnp.float32),
        "w3": scale * jax.random.normal(k5, (D_LAT, D_IN), jnp.float32),
        "b3": scale * jax.random.normal(k6, (1, D_IN), jnp.float32),
    }


def reference_forward(h, eps, p):
    """Pure-JAX reference of the same math for a sanity check."""
    mu = h @ p["w1"] + p["b1"]
    logvar = h @ p["w2"] + p["b2"]
    z = mu + jnp.exp(0.5 * logvar) * eps
    z3 = z @ p["w3"] + p["b3"]
    return z3, mu, logvar


if __name__ == "__main__":
    key = jax.random.PRNGKey(0)
    kp, kh, ke = jax.random.split(key, 3)

    B = 2
    params = init_params(kp)
    # h = EMOEncode(x): encoder output, 192-dim feature per sample (encoder body not given).
    h = jax.random.normal(kh, (B, D_IN), jnp.float32)
    # eps: deterministic replacement for torch.randn(*mu.size()) in reparameterize.
    eps = jax.random.normal(ke, (B, D_LAT), jnp.float32)

    z3, mu, logvar = emonet_bottleneck(h, eps, params)
    jax.block_until_ready((z3, mu, logvar))

    z_ref, mu_ref, lv_ref = reference_forward(h, eps, params)
    assert z3.shape == (B, D_IN) and mu.shape == (B, D_LAT) and logvar.shape == (B, D_LAT)
    assert jnp.allclose(z3, z_ref, atol=1e-5)
    assert jnp.allclose(mu, mu_ref, atol=1e-5)
    assert jnp.allclose(logvar, lv_ref, atol=1e-5)

    print("KERNEL_OK")
</pallas_src>

<mosaic_0001>
module attributes {stable_mosaic.version = 11 : i64} {
  func.func @_emonet_bottleneck_kernel(%arg0: i32, %arg1: memref<8x192xf32, #tpu.memory_space<vmem>>, %arg2: memref<8x32xf32, #tpu.memory_space<vmem>>, %arg3: memref<192x64xf32, #tpu.memory_space<vmem>>, %arg4: memref<1x64xf32, #tpu.memory_space<vmem>>, %arg5: memref<32x192xf32, #tpu.memory_space<vmem>>, %arg6: memref<1x192xf32, #tpu.memory_space<vmem>>, %arg7: memref<8x256xf32, #tpu.memory_space<vmem>>) attributes {dimension_semantics = [#tpu.dimension_semantics<parallel>], iteration_bounds = array<i64: 1>, scalar_prefetch = 0 : i64, scratch_operands = 0 : i64, tpu.core_type = #tpu.core_type<tc>, window_params = [{transform_indices = @transform_0, window_bounds = array<i64: 8, 192>}, {transform_indices = @transform_1, window_bounds = array<i64: 8, 32>}, {pipeline_mode = #tpu.pipeline_mode<synchronous>, transform_indices = @transform_2, window_bounds = array<i64: 192, 64>}, {pipeline_mode = #tpu.pipeline_mode<synchronous>, transform_indices = @transform_3, window_bounds = array<i64: 1, 64>}, {pipeline_mode = #tpu.pipeline_mode<synchronous>, transform_indices = @transform_4, window_bounds = array<i64: 32, 192>}, {pipeline_mode = #tpu.pipeline_mode<synchronous>, transform_indices = @transform_5, window_bounds = array<i64: 1, 192>}, {transform_indices = @transform_6, window_bounds = array<i64: 8, 256>}]} {
    %c0 = arith.constant 0 : index
    %c0_0 = arith.constant 0 : index
    %0 = vector.load %arg1[%c0, %c0_0] : memref<8x192xf32, #tpu.memory_space<vmem>>, vector<8x192xf32>
    %c0_1 = arith.constant 0 : index
    %c0_2 = arith.constant 0 : index
    %1 = vector.load %arg2[%c0_1, %c0_2] : memref<8x32xf32, #tpu.memory_space<vmem>>, vector<8x32xf32>
    %c0_3 = arith.constant 0 : index
    %c0_4 = arith.constant 0 : index
    %2 = vector.load %arg3[%c0_3, %c0_4] : memref<192x64xf32, #tpu.memory_space<vmem>>, vector<192x64xf32>
    %cst = arith.constant dense<0.000000e+00> : vector<8x64xf32>
    %3 = tpu.matmul %0, %2, %cst {dimension_numbers = #tpu.dot_dimension_numbers<[1], [0], [0], [1], [0, 0, 1, 1], [], []>} : vector<8x192xf32>, vector<192x64xf32>, vector<8x64xf32> -> vector<8x64xf32>
    %c0_5 = arith.constant 0 : index
    %c0_6 = arith.constant 0 : index
    %4 = vector.load %arg4[%c0_5, %c0_6] : memref<1x64xf32, #tpu.memory_space<vmem>>, vector<1x64xf32>
    %5 = vector.broadcast %4 : vector<1x64xf32> to vector<8x64xf32>
    %6 = arith.addf %3, %5 : vector<8x64xf32>
    %7 = vector.extract_strided_slice %6 {offsets = [0, 0], sizes = [8, 32], strides = [1, 1]} : vector<8x64xf32> to vector<8x32xf32>
    %8 = vector.extract_strided_slice %6 {offsets = [0, 32], sizes = [8, 32], strides = [1, 1]} : vector<8x64xf32> to vector<8x32xf32>
    %cst_7 = arith.constant 5.000000e-01 : f32
    %9 = vector.broadcast %cst_7 : f32 to vector<8x32xf32>
    %10 = arith.mulf %9, %8 : vector<8x32xf32>
    %11 = math.exp %10 : vector<8x32xf32>
    %12 = arith.mulf %11, %1 : vector<8x32xf32>
    %13 = arith.addf %7, %12 : vector<8x32xf32>
    %c0_8 = arith.constant 0 : index
    %c0_9 = arith.constant 0 : index
    %14 = vector.load %arg5[%c0_8, %c0_9] : memref<32x192xf32, #tpu.memory_space<vmem>>, vector<32x192xf32>
    %cst_10 = arith.constant dense<0.000000e+00> : vector<8x192xf32>
    %15 = tpu.matmul %13, %14, %cst_10 {dimension_numbers = #tpu.dot_dimension_numbers<[1], [0], [0], [1], [0, 0, 1, 1], [], []>} : vector<8x32xf32>, vector<32x192xf32>, vector<8x192xf32> -> vector<8x192xf32>
    %c0_11 = arith.constant 0 : index
    %c0_12 = arith.constant 0 : index
    %16 = vector.load %arg6[%c0_11, %c0_12] : memref<1x192xf32, #tpu.memory_space<vmem>>, vector<1x192xf32>
    %17 = vector.broadcast %16 : vector<1x192xf32> to vector<8x192xf32>
    %18 = arith.addf %15, %17 : vector<8x192xf32>
    %19 = tpu.concatenate %18, %6 in 1 : vector<8x192xf32>, vector<8x64xf32> -> vector<8x256xf32>
    %c0_13 = arith.constant 0 : index
    %c0_14 = arith.constant 0 : index
    %20 = vector.load %arg7[%c0_13, %c0_14] : memref<8x256xf32, #tpu.memory_space<vmem>>, vector<8x256xf32>
    tpu.vector_store %arg7[%c0_13, %c0_14], %19 {strides = array<i32>} : memref<8x256xf32, #tpu.memory_space<vmem>>, vector<8x256xf32>,
    return
  }
  func.func @transform_0(%arg0: i32) -> (i32, i32) {
    %c0_i32 = arith.constant 0 : i32
    %c0_i32_0 = arith.constant 0 : i32
    return %arg0, %c0_i32 : i32, i32
  }
  func.func @transform_1(%arg0: i32) -> (i32, i32) {
    %c0_i32 = arith.constant 0 : i32
    %c0_i32_0 = arith.constant 0 : i32
    return %arg0, %c0_i32 : i32, i32
  }
  func.func @transform_2(%arg0: i32) -> (i32, i32) {
    %c0_i32 = arith.constant 0 : i32
    %c0_i32_0 = arith.constant 0 : i32
    %c0_i32_1 = arith.constant 0 : i32
    return %c0_i32, %c0_i32_0 : i32, i32
  }
  func.func @transform_3(%arg0: i32) -> (i32, i32) {
    %c0_i32 = arith.constant 0 : i32
    %c0_i32_0 = arith.constant 0 : i32
    %c0_i32_1 = arith.constant 0 : i32
    return %c0_i32, %c0_i32_0 : i32, i32
  }
  func.func @transform_4(%arg0: i32) -> (i32, i32) {
    %c0_i32 = arith.constant 0 : i32
    %c0_i32_0 = arith.constant 0 : i32
    %c0_i32_1 = arith.constant 0 : i32
    return %c0_i32, %c0_i32_0 : i32, i32
  }
  func.func @transform_5(%arg0: i32) -> (i32, i32) {
    %c0_i32 = arith.constant 0 : i32
    %c0_i32_0 = arith.constant 0 : i32
    %c0_i32_1 = arith.constant 0 : i32
    return %c0_i32, %c0_i32_0 : i32, i32
  }
  func.func @transform_6(%arg0: i32) -> (i32, i32) {
    %c0_i32 = arith.constant 0 : i32
    %c0_i32_0 = arith.constant 0 : i32
    return %arg0, %c0_i32 : i32, i32
  }
}

</mosaic_0001>

<llo_original>
// kernel: tpu_custom_call.1
$region0: #{tpu_custom_call.1}
  #allocation0 [shape = 'u32[]', space=smem, size = 0x4, offset = 0x4, fixed_abs, tag = 'smem constant byte address 0x4 - core index']
  #allocation1 [shape = 'u32[144,128]{1,0:T(1,128)}', space=vmem, size = 0x12000, scoped, tag = 'internal scratch']
  %s0 = inlined_call_operand.vmem [shape: f32[8,192], index: 0, kind: input, shape index: {}]
  %s1 = inlined_call_operand.vmem [shape: f32[8,32], index: 1, kind: input, shape index: {}]
  %s2 = inlined_call_operand.vmem [shape: f32[192,64], index: 2, kind: input, shape index: {}]
  %s3 = inlined_call_operand.vmem [shape: f32[1,64], index: 3, kind: input, shape index: {}]
  %s4 = inlined_call_operand.vmem [shape: f32[32,192], index: 4, kind: input, shape index: {}]
  %s5 = inlined_call_operand.vmem [shape: f32[1,192], index: 5, kind: input, shape index: {}]
  %s6 = inlined_call_operand.hbm [shape: f32[8,256], index: 6, kind: output, shape index: {}]
  %s7 = sld [smem:[#allocation0]]
  $region34: #{tpu_custom_call.1} parent=0
    _
  %s9 = ssub.s32 1, %s7
  %s10 = scalar_select 0, %s9, %s7
  $region1: #{tpu_custom_call.1} parent=0
    #allocation2 [shape = 'u8[8192]{0}', space=vmem, size = 0x2000, scoped, tag = 'output window, operand 0, single buffered']
    #allocation3 [shape = 's32[1]{0}', space=sflag, size = 0x4, scoped, tag = 'scoped memory for tpu_custom_call.1']
    %11 = vsyncpa [#allocation3], 0
    // Predicated region
    $region2: #{tpu_custom_call.1} parent=1 // pred_check
      _
    $region3: #{tpu_custom_call.1} parent=1 // pred_check_branch
      %13 = sbr.rel (0) target = $region5
    $region4: #{tpu_custom_call.1} parent=1 // pred_region
      _
    $region5: #{tpu_custom_call.1} parent=1 // pred_fallthru
      _
    // Predicated region
    $region6: #{tpu_custom_call.1} parent=1 // pred_check
      _
    $region7: #{tpu_custom_call.1} parent=1 // pred_check_branch
      %15 = sbr.rel (0) target = $region9
    $region8: #{tpu_custom_call.1} parent=1 // pred_region
      _
    $region9: #{tpu_custom_call.1} parent=1 // pred_fallthru
      _
    // Predicated region
    $region10: #{tpu_custom_call.1} parent=1 // pred_check
      _
    $region11: #{tpu_custom_call.1} parent=1 // pred_check_branch
      %17 = sbr.rel (0) target = $region13
    $region12: #{tpu_custom_call.1} parent=1 // pred_region
      _
    $region13: #{tpu_custom_call.1} parent=1 // pred_fallthru
      _
    // Predicated region
    $region14: #{tpu_custom_call.1} parent=1 // pred_check
      _
    $region15: #{tpu_custom_call.1} parent=1 // pred_check_branch
      %19 = sbr.rel (0) target = $region17
    $region16: #{tpu_custom_call.1} parent=1 // pred_region
      _
    $region17: #{tpu_custom_call.1} parent=1 // pred_fallthru
      _
    // Predicated region
    $region18: #{tpu_custom_call.1} parent=1 // pred_check
      _
    $region19: #{tpu_custom_call.1} parent=1 // pred_check_branch
      %21 = sbr.rel (0) target = $region21
    $region20: #{tpu_custom_call.1} parent=1 // pred_region
      _
    $region21: #{tpu_custom_call.1} parent=1 // pred_fallthru
      _
    // Predicated region
    $region22: #{tpu_custom_call.1} parent=1 // pred_check
      _
    $region23: #{tpu_custom_call.1} parent=1 // pred_check_branch
      %23 = sbr.rel (0) target = $region25
    $region24: #{tpu_custom_call.1} parent=1 // pred_region
      _
    $region25: #{tpu_custom_call.1} parent=1 // pred_fallthru
      _
    %v24 = vld [vmem:[%s0] sm:$0xff]
    %v25 = vld [vmem:[%s0 + $0x8] sm:$0xff]
    %v26 = vld [vmem:[%s1] sm:$0xff]
    %v27 = vld [vmem:[%s2] sm:$0xff]
    %v28 = vld [vmem:[%s2 + $0x8] sm:$0xff]
    %v29 = vld [vmem:[%s2 + $0x10] sm:$0xff]
    %v30 = vld [vmem:[%s2 + $0x18] sm:$0xff]
    %v31 = vld [vmem:[%s2 + $0x20] sm:$0xff]
    %v32 = vld [vmem:[%s2 + $0x28] sm:$0xff]
    %v33 = vld [vmem:[%s2 + $0x30] sm:$0xff]
    %v34 = vld [vmem:[%s2 + $0x38] sm:$0xff]
    %v35 = vld [vmem:[%s2 + $0x40] sm:$0xff]
    %v36 = vld [vmem:[%s2 + $0x48] sm:$0xff]
    %v37 = vld [vmem:[%s2 + $0x50] sm:$0xff]
    %v38 = vld [vmem:[%s2 + $0x58] sm:$0xff]
    %v39 = vld [vmem:[%s2 + $0x60] sm:$0xff]
    %v40 = vld [vmem:[%s2 + $0x68] sm:$0xff]
    %v41 = vld [vmem:[%s2 + $0x70] sm:$0xff]
    %v42 = vld [vmem:[%s2 + $0x78] sm:$0xff]
    %v43 = vld [vmem:[%s2 + $0x80] sm:$0xff]
    %v44 = vld [vmem:[%s2 + $0x88] sm:$0xff]
    %v45 = vld [vmem:[%s2 + $0x90] sm:$0xff]
    %v46 = vld [vmem:[%s2 + $0x98] sm:$0xff]
    %v47 = vld [vmem:[%s2 + $0xa0] sm:$0xff]
    %v48 = vld [vmem:[%s2 + $0xa8] sm:$0xff]
    %v49 = vld [vmem:[%s2 + $0xb0] sm:$0xff]
    %v50 = vld [vmem:[%s2 + $0xb8] sm:$0xff]
    %v51 = vld [vmem:[%s3] sm:$0x1]
    %v53 = vlaneseq
    %v54 = vshrl.u32 %v53, 7
    %v55 = vsub.s32 0, %v54
    %v56 = vrot.slane %v51, %v55
    %vm58 = vcmask 523264
    %v60 = vsel %vm58, %v25, 0
    %62 = vmatprep.subr.mxu0 0.0
    %63 = vmatpush1.msra.mxu0 %v42
    %64 = vmatprep.subr.mxu0 0.0
    %65 = vmatpush1.msra.mxu0 %v41
    %66 = vmatprep.subr.mxu0 0.0
    %67 = vmatpush1.msra.mxu0 %v40
    %68 = vmatprep.subr.mxu0 0.0
    %69 = vmatpush1.msra.mxu0 %v39
    %70 = vmatprep.subr.mxu0 0.0
    %71 = vmatpush1.msra.mxu0 %v38
    %72 = vmatprep.subr.mxu0 0.0
    %73 = vmatpush1.msra.mxu0 %v37
    %74 = vmatprep.subr.mxu0 0.0
    %75 = vmatpush1.msra.mxu0 %v36
    %76 = vmatprep.subr.mxu0 0.0
    %77 = vmatpush1.msra.mxu0 %v35
    %78 = vmatprep.subr.mxu0 0.0
    %79 = vmatpush1.msra.mxu0 %v34
    %80 = vmatprep.subr.mxu0 0.0
    %81 = vmatpush1.msra.mxu0 %v33
    %82 = vmatprep.subr.mxu0 0.0
    %83 = vmatpush1.msra.mxu0 %v32
    %84 = vmatprep.subr.mxu0 0.0
    %85 = vmatpush1.msra.mxu0 %v31
    %86 = vmatprep.subr.mxu0 0.0
    %87 = vmatpush1.msra.mxu0 %v30
    %88 = vmatprep.subr.mxu0 0.0
    %89 = vmatpush1.msra.mxu0 %v29
    %90 = vmatprep.subr.mxu0 0.0
    %91 = vmatpush1.msra.mxu0 %v28
    %92 = vmatprep.subr.mxu0 0.0
    %93 = vmatpush1.msra.mxu0 %v27
    %94 = vmatprep.subr.mxu0 0.0
    %95 = vmatpush2.msra.mxu0 0.0
    %96 = vmatprep.subr.mxu0 0.0
    %97 = vmatpush2.msra.mxu0 0.0
    %98 = vmatprep.subr.mxu0 0.0
    %99 = vmatpush2.msra.mxu0 0.0
    %100 = vmatprep.subr.mxu0 0.0
    %101 = vmatpush2.msra.mxu0 0.0
    %102 = vmatprep.subr.mxu0 0.0
    %103 = vmatpush2.msra.mxu0 0.0
    %104 = vmatprep.subr.mxu0 0.0
    %105 = vmatpush2.msra.mxu0 0.0
    %106 = vmatprep.subr.mxu0 0.0
    %107 = vmatpush2.msra.mxu0 0.0
    %108 = vmatprep.subr.mxu0 0.0
    %109 = vmatpush2.msra.mxu0 0.0
    %110 = vmatprep.subr.mxu0 0.0
    %111 = vmatpush2.msra.mxu0 %v50
    %112 = vmatprep.subr.mxu0 0.0
    %113 = vmatpush2.msra.mxu0 %v49
    %114 = vmatprep.subr.mxu0 0.0
    %115 = vmatpush2.msra.mxu0 %v48
    %116 = vmatprep.subr.mxu0 0.0
    %117 = vmatpush2.msra.mxu0 %v47
    %118 = vmatprep.subr.mxu0 0.0
    %119 = vmatpush2.msra.mxu0 %v46
    %120 = vmatprep.subr.mxu0 0.0
    %121 = vmatpush2.msra.mxu0 %v45
    %122 = vmatprep.subr.mxu0 0.0
    %123 = vmatpush2.msra.mxu0 %v44
    %124 = vmatprep.subr.mxu0 0.0
    %125 = vmatpush2.msra.mxu0 %v43
    %126 = vmatprep.mubr.f32.mxu0 %v60
    %127 = vmatmul.mubr.f32.gmra.mxu0 %v24
    %v128 = vpop.f32.mrf.mxu0
    %v129 = vadd.f32 %v56, %v128
    %v130 = vpop.f32.mrf.mxu0
    %131 = vdwg.mxu0
    %v132 = vmul.f32 %v129, 0.5
    %v133 = vmul.f32 %v132, 1.442695
    %v134 = vpow.pop %v133
    %136 = vrot.lane.b32.xlu0 %v26, 32
    %v137 = vpop.permute.xlu0 %136
    %v139 = vmul.f32 %v134, %v137
    %141 = vrot.lane.b32.xlu0 %v139, 96
    %v142 = vpop.permute.xlu0 %141
    %v144 = vadd.f32 %v129, %v142
    %v145 = vld [vmem:[%s4] sm:$0xff]
    %v146 = vld [vmem:[%s4 + $0x8] sm:$0xff]
    %v147 = vld [vmem:[%s4 + $0x10] sm:$0xff]
    %v148 = vld [vmem:[%s4 + $0x18] sm:$0xff]
    %v149 = vld [vmem:[%s4 + $0x20] sm:$0xff]
    %v150 = vld [vmem:[%s4 + $0x28] sm:$0xff]
    %v151 = vld [vmem:[%s4 + $0x30] sm:$0xff]
    %v152 = vld [vmem:[%s4 + $0x38] sm:$0xff]
    %v153 = vld [vmem:[%s5] sm:$0x3]
    %v155 = vlaneseq
    %v156 = vshrl.u32 %v155, 7
    %v157 = vsub.s32 0, %v156
    %v158 = vrot.slane %v153, %v157
    %v159 = vlaneseq
    %v160 = vshrl.u32 %v159, 7
    %v161 = vsub.s32 1, %v160
    %v162 = vrot.slane %v153, %v161
    %vm165 = vcmask 261120
    %v167 = vsel %vm165, %v144, 0
    %169 = vmatprep.subr.mxu0 0.0
    %170 = vmatpush1.msra.mxu0 0.0
    %171 = vmatprep.subr.mxu0 0.0
    %172 = vmatpush1.msra.mxu0 0.0
    %173 = vmatprep.subr.mxu0 0.0
    %174 = vmatpush1.msra.mxu0 0.0
    %175 = vmatprep.subr.mxu0 0.0
    %176 = vmatpush1.msra.mxu0 0.0
    %177 = vmatprep.subr.mxu0 0.0
    %178 = vmatpush1.msra.mxu0 0.0
    %179 = vmatprep.subr.mxu0 0.0
    %180 = vmatpush1.msra.mxu0 0.0
    %181 = vmatprep.subr.mxu0 0.0
    %182 = vmatpush1.msra.mxu0 0.0
    %183 = vmatprep.subr.mxu0 0.0
    %184 = vmatpush1.msra.mxu0 0.0
    %185 = vmatprep.subr.mxu0 0.0
    %186 = vmatpush1.msra.mxu0 0.0
    %187 = vmatprep.subr.mxu0 0.0
    %188 = vmatpush1.msra.mxu0 0.0
    %189 = vmatprep.subr.mxu0 0.0
    %190 = vmatpush1.msra.mxu0 0.0
    %191 = vmatprep.subr.mxu0 0.0
    %192 = vmatpush1.msra.mxu0 0.0
    %193 = vmatprep.subr.mxu0 %v152
    %194 = vmatpush1.msra.mxu0 %v151
    %195 = vmatprep.subr.mxu0 %v150
    %196 = vmatpush1.msra.mxu0 %v149
    %197 = vmatprep.subr.mxu0 %v148
    %198 = vmatpush1.msra.mxu0 %v147
    %199 = vmatprep.subr.mxu0 %v146
    %200 = vmatpush1.msra.mxu0 %v145
    %201 = vmatprep.subr.mxu0 0.0
    %202 = vmatpush2.msra.mxu0 0.0
    %203 = vmatprep.subr.mxu0 0.0
    %204 = vmatpush2.msra.mxu0 0.0
    %205 = vmatprep.subr.mxu0 0.0
    %206 = vmatpush2.msra.mxu0 0.0
    %207 = vmatprep.subr.mxu0 0.0
    %208 = vmatpush2.msra.mxu0 0.0
    %209 = vmatprep.subr.mxu0 0.0
    %210 = vmatpush2.msra.mxu0 0.0
    %211 = vmatprep.subr.mxu0 0.0
    %212 = vmatpush2.msra.mxu0 0.0
    %213 = vmatprep.subr.mxu0 0.0
    %214 = vmatpush2.msra.mxu0 0.0
    %215 = vmatprep.subr.mxu0 0.0
    %216 = vmatpush2.msra.mxu0 0.0
    %217 = vmatprep.subr.mxu0 0.0
    %218 = vmatpush2.msra.mxu0 0.0
    %219 = vmatprep.subr.mxu0 0.0
    %220 = vmatpush2.msra.mxu0 0.0
    %221 = vmatprep.subr.mxu0 0.0
    %222 = vmatpush2.msra.mxu0 0.0
    %223 = vmatprep.subr.mxu0 0.0
    %224 = vmatpush2.msra.mxu0 0.0
    %225 = vmatprep.subr.mxu0 0.0
    %226 = vmatpush2.msra.mxu0 0.0
    %227 = vmatprep.subr.mxu0 0.0
    %228 = vmatpush2.msra.mxu0 0.0
    %229 = vmatprep.subr.mxu0 0.0
    %230 = vmatpush2.msra.mxu0 0.0
    %231 = vmatprep.subr.mxu0 0.0
    %232 = vmatpush2.msra.mxu0 0.0
    %233 = vmatprep.mubr.f32.mxu0 0.0
    %234 = vmatmul.mubr.f32.gmra.mxu0 %v167
    %v235 = vpop.f32.mrf.mxu0
    %v236 = vadd.f32 %v158, %v235
    %v237 = vpop.f32.mrf.mxu0
    %v238 = vadd.f32 %v162, %v237
    %239 = vdwg.mxu0
    %241 = vrot.lane.b32.xlu0 %v129, 64
    %v242 = vpop.permute.xlu0 %241
    %v244 = vsel %vm58, %v238, %v242
    %245 = vst [vmem:[#allocation2] sm:$0xff] %v236
    %246 = vst [vmem:[#allocation2 + $0x8] sm:$0xff] %v244
    // Predicated region
    $region26: #{tpu_custom_call.1} parent=1 // pred_check
      _
    $region27: #{tpu_custom_call.1} parent=1 // pred_check_branch
      %248 = sbr.rel (0) target = $region29
    $region28: #{tpu_custom_call.1} parent=1 // pred_region
      %s250 = ssub.s32 256, 256
      %251 = vsyncadd [#allocation3], %s250
      %s253 = sshll.u32 [#allocation2], 4
      %s254 = int_to_ptr.vmem [resolvable:$true] %s253
      %256 = dma.vmem_to_hbm [thread:$0]  %s254, 256, %s6, [#allocation3]
    $region29: #{tpu_custom_call.1} parent=1 // pred_fallthru
      _
    // Predicated region
    $region30: #{tpu_custom_call.1} parent=1 // pred_check
      _
    $region31: #{tpu_custom_call.1} parent=1 // pred_check_branch
      %258 = sbr.rel (0) target = $region33
    $region32: #{tpu_custom_call.1} parent=1 // pred_region
      %259 = dma.done [#allocation3], 256
    $region33: #{tpu_custom_call.1} parent=1 // pred_fallthru
      _
    %260 = vsyncpa [#allocation3], 1

</llo_original>
